<compile_context>
chip_gen: v6e
topology: v6e:2x2x1
jax: 0.10.0
libtpu: 0.0.40
codegen_flags: <defaults>
</compile_context>

<pallas_src>
import jax
import jax.numpy as jnp
from jax.experimental import pallas as pl
from jax.experimental.pallas import tpu as pltpu


def _round_up(x, m):
    return ((x + m - 1) // m) * m


def _critic_kernel(s_ref, w1t_ref, b1_ref, w2_ref, b2_ref, v_ref):
    """Batch-on-lanes critic forward for one batch tile.

    s_ref  : (in_dim, TB)     VMEM  observations, batch on the lane axis
    w1t_ref: (hidden, in_dim) VMEM  layer-1 weight (pre-transposed)
    b1_ref : (hidden, 1)      VMEM  layer-1 bias column (broadcast over lanes)
    w2_ref : (hidden, 1)      VMEM  layer-2 weight column
    b2_ref : (1,)             SMEM  layer-2 bias scalar
    v_ref  : (1, TB)          VMEM  value output, lane-dense
    """
    # Layer 1 on the MXU: (hidden, in) @ (in, TB) -> (hidden, TB), f32 accumulate.
    h = jnp.dot(w1t_ref[...], s_ref[...], preferred_element_type=jnp.float32)
    h = jnp.maximum(h + b1_ref[...], 0.0)                     # bias + ReLU (VPU)

    # Layer 2 (out_dim == 1) off the MXU: per-lane weighted sublane reduction.
    v = jnp.sum(h * w2_ref[...], axis=0, keepdims=True)       # (1, TB)
    v_ref[...] = (v + b2_ref[0]).astype(v_ref.dtype)


def critic_forward(s, w1, b1, w2, b2, *, batch_tile=2048):
    """s: (B, input_size) float32 -> (B, 1) float32.

    w1: (input_size, hidden), b1: (1, hidden), w2: (hidden, 1), b2: (1, 1).
    """
    B, in_dim = s.shape
    hidden = w1.shape[1]
    out_dim = w2.shape[1]
    assert out_dim == 1, "Critic value head must be scalar."
    assert batch_tile % 128 == 0, "batch_tile must be lane-aligned."

    # Lane-dense transposed layout: batch on the last (lane) axis.
    s_t = s.T                                    # (in_dim, B)
    w1t = w1.T                                   # (hidden, in_dim)
    b1c = jnp.reshape(b1, (hidden, 1))           # (hidden, 1)
    w2c = jnp.reshape(w2, (hidden, 1))           # (hidden, 1)
    b2s = jnp.reshape(b2, (out_dim,))            # (1,)  -> SMEM scalar

    # Lane-aligned batch tiles; pad the batch tail (padded columns are sliced off).
    tb = min(batch_tile, _round_up(B, 128))
    b_pad = _round_up(B, tb)
    if b_pad != B:
        s_t = jnp.pad(s_t, ((0, 0), (0, b_pad - B)))
    num_tiles = b_pad // tb

    cost = pl.CostEstimate(
        flops=2 * b_pad * hidden * (in_dim + 1),
        transcendentals=0,
        bytes_accessed=4 * (b_pad * (in_dim + out_dim)
                            + in_dim * hidden + 2 * hidden + out_dim),
    )

    v_t = pl.pallas_call(
        _critic_kernel,
        out_shape=jax.ShapeDtypeStruct((1, b_pad), jnp.float32),
        grid=(num_tiles,),
        in_specs=[
            # Observation tile streamed over the batch grid (auto double-buffered).
            pl.BlockSpec((in_dim, tb), lambda i: (0, i)),
            # Weights / biases: constant block index -> stay resident in VMEM.
            pl.BlockSpec((hidden, in_dim), lambda i: (0, 0)),
            pl.BlockSpec((hidden, 1), lambda i: (0, 0)),
            pl.BlockSpec((hidden, 1), lambda i: (0, 0)),
            # Scalar bias in SMEM: avoids a padded (8,128) VMEM tile + DMA.
            pl.BlockSpec(memory_space=pltpu.MemorySpace.SMEM),
        ],
        out_specs=pl.BlockSpec((1, tb), lambda i: (0, i)),
        compiler_params=pltpu.CompilerParams(
            # Independent batch tiles: shard across TensorCores on v7x.
            dimension_semantics=("parallel",),
        ),
        cost_estimate=cost,
    )(s_t, w1t, b1c, w2c, b2s)

    # (1, B_pad) -> (B, 1)
    return v_t[0, :B].reshape(B, 1)


def init_critic_params(key, input_size, hidden_size, output_size=1):
    """Deterministic init mimicking nn.Linear's U(-1/sqrt(fan_in), 1/sqrt(fan_in))."""
    k1, k2, k3, k4 = jax.random.split(key, 4)
    lim1 = 1.0 / jnp.sqrt(jnp.float32(input_size))
    lim2 = 1.0 / jnp.sqrt(jnp.float32(hidden_size))
    # Stored as [in, out] (transpose of PyTorch's [out, in]).
    w1 = jax.random.uniform(k1, (input_size, hidden_size), jnp.float32, -lim1, lim1)
    b1 = jax.random.uniform(k2, (1, hidden_size), jnp.float32, -lim1, lim1)
    w2 = jax.random.uniform(k3, (hidden_size, output_size), jnp.float32, -lim2, lim2)
    b2 = jax.random.uniform(k4, (1, output_size), jnp.float32, -lim2, lim2)
    return w1, b1, w2, b2


def critic_reference(s, w1, b1, w2, b2):
    x = jnp.maximum(s @ w1 + b1, 0.0)
    return x @ w2 + b2


if __name__ == "__main__":
    # LunarLanderContinuous-v2 observation size = 8.
    input_size, hidden_size, output_size = 8, 32, 1

    key = jax.random.PRNGKey(0)
    k_s, k_p, k_s2 = jax.random.split(key, 3)
    w1, b1, w2, b2 = init_critic_params(k_p, input_size, hidden_size, output_size)

    # Small-batch check (single tile, padded to the 128-lane boundary).
    batch = 2
    s = jax.random.normal(k_s, (batch, input_size), jnp.float32)
    v = critic_forward(s, w1, b1, w2, b2)
    jax.block_until_ready(v)
    v_ref = critic_reference(s, w1, b1, w2, b2)
    assert v.shape == (batch, output_size)
    assert jnp.allclose(v, v_ref, atol=1e-5, rtol=1e-5)

    # Multi-tile + ragged-tail check (grid of 3 tiles with padding).
    batch2 = 300
    s2 = jax.random.normal(k_s2, (batch2, input_size), jnp.float32)
    v2 = critic_forward(s2, w1, b1, w2, b2, batch_tile=128)
    jax.block_until_ready(v2)
    v2_ref = critic_reference(s2, w1, b1, w2, b2)
    assert v2.shape == (batch2, output_size)
    assert jnp.allclose(v2, v2_ref, atol=1e-5, rtol=1e-5)

    print("KERNEL_OK")
</pallas_src>

<mosaic_0001>
module attributes {stable_mosaic.version = 11 : i64} {
  func.func @_critic_kernel(%arg0: i32, %arg1: memref<8x128xf32, #tpu.memory_space<vmem>>, %arg2: memref<32x8xf32, #tpu.memory_space<vmem>>, %arg3: memref<32x1xf32, #tpu.memory_space<vmem>>, %arg4: memref<32x1xf32, #tpu.memory_space<vmem>>, %arg5: memref<1xf32, #tpu.memory_space<smem>>, %arg6: memref<1x128xf32, #tpu.memory_space<vmem>>) attributes {dimension_semantics = [#tpu.dimension_semantics<parallel>], iteration_bounds = array<i64: 1>, scalar_prefetch = 0 : i64, scratch_operands = 0 : i64, tpu.core_type = #tpu.core_type<tc>, window_params = [{transform_indices = @transform_0, window_bounds = array<i64: 8, 128>}, {pipeline_mode = #tpu.pipeline_mode<synchronous>, transform_indices = @transform_1, window_bounds = array<i64: 32, 8>}, {pipeline_mode = #tpu.pipeline_mode<synchronous>, transform_indices = @transform_2, window_bounds = array<i64: 32, 1>}, {pipeline_mode = #tpu.pipeline_mode<synchronous>, transform_indices = @transform_3, window_bounds = array<i64: 32, 1>}, {transform_indices = @transform_4, window_bounds = array<i64: 1>}, {transform_indices = @transform_5, window_bounds = array<i64: 1, 128>}]} {
    %c0 = arith.constant 0 : index
    %c0_0 = arith.constant 0 : index
    %0 = vector.load %arg2[%c0, %c0_0] : memref<32x8xf32, #tpu.memory_space<vmem>>, vector<32x8xf32>
    %c0_1 = arith.constant 0 : index
    %c0_2 = arith.constant 0 : index
    %1 = vector.load %arg1[%c0_1, %c0_2] : memref<8x128xf32, #tpu.memory_space<vmem>>, vector<8x128xf32>
    %cst = arith.constant dense<0.000000e+00> : vector<32x128xf32>
    %2 = tpu.matmul %0, %1, %cst {dimension_numbers = #tpu.dot_dimension_numbers<[1], [0], [0], [1], [0, 0, 1, 1], [], []>} : vector<32x8xf32>, vector<8x128xf32>, vector<32x128xf32> -> vector<32x128xf32>
    %c0_3 = arith.constant 0 : index
    %c0_4 = arith.constant 0 : index
    %3 = vector.load %arg3[%c0_3, %c0_4] : memref<32x1xf32, #tpu.memory_space<vmem>>, vector<32x1xf32>
    %4 = vector.broadcast %3 : vector<32x1xf32> to vector<32x128xf32>
    %5 = arith.addf %2, %4 : vector<32x128xf32>
    %cst_5 = arith.constant 0.000000e+00 : f32
    %6 = vector.broadcast %cst_5 : f32 to vector<32x128xf32>
    %7 = arith.maximumf %5, %6 : vector<32x128xf32>
    %c0_6 = arith.constant 0 : index
    %c0_7 = arith.constant 0 : index
    %8 = vector.load %arg4[%c0_6, %c0_7] : memref<32x1xf32, #tpu.memory_space<vmem>>, vector<32x1xf32>
    %9 = vector.broadcast %8 : vector<32x1xf32> to vector<32x128xf32>
    %10 = arith.mulf %7, %9 : vector<32x128xf32>
    %cst_8 = arith.constant dense<0.000000e+00> : vector<128xf32>
    %11 = vector.multi_reduction <add>, %10, %cst_8 [0] : vector<32x128xf32> to vector<128xf32>
    %12 = vector.shape_cast %11 : vector<128xf32> to vector<1x128xf32>
    %c0_9 = arith.constant 0 : index
    %13 = memref.load %arg5[%c0_9] : memref<1xf32, #tpu.memory_space<smem>>
    %14 = vector.broadcast %13 : f32 to vector<1x128xf32>
    %15 = arith.addf %12, %14 : vector<1x128xf32>
    %c0_10 = arith.constant 0 : index
    %c0_11 = arith.constant 0 : index
    %16 = vector.load %arg6[%c0_10, %c0_11] : memref<1x128xf32, #tpu.memory_space<vmem>>, vector<1x128xf32>
    tpu.vector_store %arg6[%c0_10, %c0_11], %15 {strides = array<i32>} : memref<1x128xf32, #tpu.memory_space<vmem>>, vector<1x128xf32>,
    return
  }
  func.func @transform_0(%arg0: i32) -> (i32, i32) {
    %c0_i32 = arith.constant 0 : i32
    %c0_i32_0 = arith.constant 0 : i32
    return %c0_i32, %arg0 : i32, i32
  }
  func.func @transform_1(%arg0: i32) -> (i32, i32) {
    %c0_i32 = arith.constant 0 : i32
    %c0_i32_0 = arith.constant 0 : i32
    %c0_i32_1 = arith.constant 0 : i32
    return %c0_i32, %c0_i32_0 : i32, i32
  }
  func.func @transform_2(%arg0: i32) -> (i32, i32) {
    %c0_i32 = arith.constant 0 : i32
    %c0_i32_0 = arith.constant 0 : i32
    %c0_i32_1 = arith.constant 0 : i32
    return %c0_i32, %c0_i32_0 : i32, i32
  }
  func.func @transform_3(%arg0: i32) -> (i32, i32) {
    %c0_i32 = arith.constant 0 : i32
    %c0_i32_0 = arith.constant 0 : i32
    %c0_i32_1 = arith.constant 0 : i32
    return %c0_i32, %c0_i32_0 : i32, i32
  }
  func.func @transform_4(%arg0: i32) -> i32 {
    %c0_i32 = arith.constant 0 : i32
    %c0_i32_0 = arith.constant 0 : i32
    return %c0_i32 : i32
  }
  func.func @transform_5(%arg0: i32) -> (i32, i32) {
    %c0_i32 = arith.constant 0 : i32
    %c0_i32_0 = arith.constant 0 : i32
    return %c0_i32, %arg0 : i32, i32
  }
}

</mosaic_0001>

<llo_original>
// kernel: tpu_custom_call.1
$region0: #{tpu_custom_call.1}
  #allocation0 [shape = 'u32[]', space=smem, size = 0x4, offset = 0x4, fixed_abs, tag = 'smem constant byte address 0x4 - core index']
  #allocation1 [shape = 'u32[144,128]{1,0:T(1,128)}', space=vmem, size = 0x12000, scoped, tag = 'internal scratch']
  #allocation2 [shape = 'f32[1]{0:T(128)S(6)}', space=smem, size = 0x200, scoped, tag = 'scoped memory for tpu_custom_call.1']
  %s0 = inlined_call_operand.vmem [shape: f32[8,128], index: 0, kind: input, shape index: {}]
  %s1 = inlined_call_operand.vmem [shape: f32[32,8], index: 1, kind: input, shape index: {}]
  %s2 = inlined_call_operand.vmem [shape: f32[32,1], index: 2, kind: input, shape index: {}]
  %s3 = inlined_call_operand.vmem [shape: f32[32,1], index: 3, kind: input, shape index: {}]
  %s4 = inlined_call_operand.<no memory space> [shape: f32[1], index: 4, kind: input, shape index: {}]
  %s5 = inlined_call_operand.hbm [shape: f32[1,128], index: 5, kind: output, shape index: {}]
  %s6 = sld [smem:[#allocation0]]
  $region30: #{tpu_custom_call.1} parent=0
    _
  %s8 = ssub.s32 1, %s6
  %s9 = scalar_select 0, %s8, %s6
  %10 = sst [smem:[#allocation2]] %s4
  $region1: #{tpu_custom_call.1} parent=0
    #allocation3 [shape = 'u8[512]{0}', space=vmem, size = 0x400, scoped, tag = 'output window, operand 0, single buffered']
    #allocation4 [shape = 's32[1]{0}', space=sflag, size = 0x4, scoped, tag = 'scoped memory for tpu_custom_call.1']
    %11 = vsyncpa [#allocation4], 0
    // Predicated region
    $region2: #{tpu_custom_call.1} parent=1 // pred_check
      _
    $region3: #{tpu_custom_call.1} parent=1 // pred_check_branch
      %13 = sbr.rel (0) target = $region5
    $region4: #{tpu_custom_call.1} parent=1 // pred_region
      _
    $region5: #{tpu_custom_call.1} parent=1 // pred_fallthru
      _
    // Predicated region
    $region6: #{tpu_custom_call.1} parent=1 // pred_check
      _
    $region7: #{tpu_custom_call.1} parent=1 // pred_check_branch
      %15 = sbr.rel (0) target = $region9
    $region8: #{tpu_custom_call.1} parent=1 // pred_region
      _
    $region9: #{tpu_custom_call.1} parent=1 // pred_fallthru
      _
    // Predicated region
    $region10: #{tpu_custom_call.1} parent=1 // pred_check
      _
    $region11: #{tpu_custom_call.1} parent=1 // pred_check_branch
      %17 = sbr.rel (0) target = $region13
    $region12: #{tpu_custom_call.1} parent=1 // pred_region
      _
    $region13: #{tpu_custom_call.1} parent=1 // pred_fallthru
      _
    // Predicated region
    $region14: #{tpu_custom_call.1} parent=1 // pred_check
      _
    $region15: #{tpu_custom_call.1} parent=1 // pred_check_branch
      %19 = sbr.rel (0) target = $region17
    $region16: #{tpu_custom_call.1} parent=1 // pred_region
      _
    $region17: #{tpu_custom_call.1} parent=1 // pred_fallthru
      _
    // Predicated region
    $region18: #{tpu_custom_call.1} parent=1 // pred_check
      _
    $region19: #{tpu_custom_call.1} parent=1 // pred_check_branch
      %21 = sbr.rel (0) target = $region21
    $region20: #{tpu_custom_call.1} parent=1 // pred_region
      _
    $region21: #{tpu_custom_call.1} parent=1 // pred_fallthru
      _
    %v22 = vld [vmem:[%s1] sm:$0xff]
    %v23 = vld [vmem:[%s1 + $0x8] sm:$0xff]
    %v24 = vld [vmem:[%s1 + $0x10] sm:$0xff]
    %v25 = vld [vmem:[%s1 + $0x18] sm:$0xff]
    %v26 = vld [vmem:[%s0] sm:$0xff]
    %v27 = vld [vmem:[%s2] sm:$0xff]
    %v28 = vld [vmem:[%s2 + $0x8] sm:$0xff]
    %v29 = vld [vmem:[%s2 + $0x10] sm:$0xff]
    %v30 = vld [vmem:[%s2 + $0x18] sm:$0xff]
    %32 = vset.pattern.permute.xlu0 0
    %33 = vperm.xlu0 %32, %v27
    %v34 = vpop.permute.xlu0 %33
    %37 = vset.pattern.permute.xlu0 0
    %38 = vperm.xlu0 %37, %v28
    %v39 = vpop.permute.xlu0 %38
    %42 = vset.pattern.permute.xlu0 0
    %43 = vperm.xlu0 %42, %v29
    %v44 = vpop.permute.xlu0 %43
    %47 = vset.pattern.permute.xlu0 0
    %48 = vperm.xlu0 %47, %v30
    %v49 = vpop.permute.xlu0 %48
    %vm51 = vcmask 64512
    %v53 = vsel %vm51, %v22, 0
    %v56 = vsel %vm51, %v23, 0
    %v59 = vsel %vm51, %v24, 0
    %v62 = vsel %vm51, %v25, 0
    %64 = vmatprep.subr.mxu0 0.0
    %65 = vmatpush1.msra.mxu0 0.0
    %66 = vmatprep.subr.mxu0 0.0
    %67 = vmatpush1.msra.mxu0 0.0
    %68 = vmatprep.subr.mxu0 0.0
    %69 = vmatpush1.msra.mxu0 0.0
    %70 = vmatprep.subr.mxu0 0.0
    %71 = vmatpush1.msra.mxu0 0.0
    %72 = vmatprep.subr.mxu0 0.0
    %73 = vmatpush1.msra.mxu0 0.0
    %74 = vmatprep.subr.mxu0 0.0
    %75 = vmatpush1.msra.mxu0 0.0
    %76 = vmatprep.subr.mxu0 0.0
    %77 = vmatpush1.msra.mxu0 0.0
    %78 = vmatprep.subr.mxu0 0.0
    %79 = vmatpush1.msra.mxu0 0.0
    %80 = vmatprep.subr.mxu0 0.0
    %81 = vmatpush1.msra.mxu0 0.0
    %82 = vmatprep.subr.mxu0 0.0
    %83 = vmatpush1.msra.mxu0 0.0
    %84 = vmatprep.subr.mxu0 0.0
    %85 = vmatpush1.msra.mxu0 0.0
    %86 = vmatprep.subr.mxu0 0.0
    %87 = vmatpush1.msra.mxu0 0.0
    %88 = vmatprep.subr.mxu0 0.0
    %89 = vmatpush1.msra.mxu0 0.0
    %90 = vmatprep.subr.mxu0 0.0
    %91 = vmatpush1.msra.mxu0 0.0
    %92 = vmatprep.subr.mxu0 0.0
    %93 = vmatpush1.msra.mxu0 0.0
    %94 = vmatprep.subr.mxu0 0.0
    %95 = vmatpush1.msra.mxu0 %v26
    %96 = vmatprep.subr.mxu0 0.0
    %97 = vmatpush2.msra.mxu0 0.0
    %98 = vmatprep.subr.mxu0 0.0
    %99 = vmatpush2.msra.mxu0 0.0
    %100 = vmatprep.subr.mxu0 0.0
    %101 = vmatpush2.msra.mxu0 0.0
    %102 = vmatprep.subr.mxu0 0.0
    %103 = vmatpush2.msra.mxu0 0.0
    %104 = vmatprep.subr.mxu0 0.0
    %105 = vmatpush2.msra.mxu0 0.0
    %106 = vmatprep.subr.mxu0 0.0
    %107 = vmatpush2.msra.mxu0 0.0
    %108 = vmatprep.subr.mxu0 0.0
    %109 = vmatpush2.msra.mxu0 0.0
    %110 = vmatprep.subr.mxu0 0.0
    %111 = vmatpush2.msra.mxu0 0.0
    %112 = vmatprep.subr.mxu0 0.0
    %113 = vmatpush2.msra.mxu0 0.0
    %114 = vmatprep.subr.mxu0 0.0
    %115 = vmatpush2.msra.mxu0 0.0
    %116 = vmatprep.subr.mxu0 0.0
    %117 = vmatpush2.msra.mxu0 0.0
    %118 = vmatprep.subr.mxu0 0.0
    %119 = vmatpush2.msra.mxu0 0.0
    %120 = vmatprep.subr.mxu0 0.0
    %121 = vmatpush2.msra.mxu0 0.0
    %122 = vmatprep.subr.mxu0 0.0
    %123 = vmatpush2.msra.mxu0 0.0
    %124 = vmatprep.subr.mxu0 0.0
    %125 = vmatpush2.msra.mxu0 0.0
    %126 = vmatprep.subr.mxu0 0.0
    %127 = vmatpush2.msra.mxu0 0.0
    %128 = vmatprep.mubr.f32.mxu0 0.0
    %129 = vmatmul.mubr.f32.gmra.mxu0 %v53
    %v130 = vpop.f32.mrf.mxu0
    %v131 = vadd.f32 %v34, %v130
    %v132 = vpop.f32.mrf.mxu0
    %133 = vmatprep.mubr.f32.mxu0 0.0
    %134 = vmatmul.mubr.f32.gmra.mxu0 %v56
    %v135 = vpop.f32.mrf.mxu0
    %v136 = vadd.f32 %v39, %v135
    %v137 = vpop.f32.mrf.mxu0
    %138 = vmatprep.mubr.f32.mxu0 0.0
    %139 = vmatmul.mubr.f32.gmra.mxu0 %v59
    %v140 = vpop.f32.mrf.mxu0
    %v141 = vadd.f32 %v44, %v140
    %v142 = vpop.f32.mrf.mxu0
    %143 = vmatprep.mubr.f32.mxu0 0.0
    %144 = vmatmul.mubr.f32.gmra.mxu0 %v62
    %v145 = vpop.f32.mrf.mxu0
    %v146 = vadd.f32 %v49, %v145
    %v147 = vpop.f32.mrf.mxu0
    %148 = vdwg.mxu0
    %v149 = vmax.f32 %v131, 0.0
    %v150 = vmax.f32 %v136, 0.0
    %v151 = vmax.f32 %v141, 0.0
    %v152 = vmax.f32 %v146, 0.0
    %v153 = vld [vmem:[%s3] sm:$0xff]
    %v154 = vld [vmem:[%s3 + $0x8] sm:$0xff]
    %v155 = vld [vmem:[%s3 + $0x10] sm:$0xff]
    %v156 = vld [vmem:[%s3 + $0x18] sm:$0xff]
    %158 = vset.pattern.permute.xlu0 0
    %159 = vperm.xlu0 %158, %v153
    %v160 = vpop.permute.xlu0 %159
    %163 = vset.pattern.permute.xlu0 0
    %164 = vperm.xlu0 %163, %v154
    %v165 = vpop.permute.xlu0 %164
    %168 = vset.pattern.permute.xlu0 0
    %169 = vperm.xlu0 %168, %v155
    %v170 = vpop.permute.xlu0 %169
    %173 = vset.pattern.permute.xlu0 0
    %174 = vperm.xlu0 %173, %v156
    %v175 = vpop.permute.xlu0 %174
    %v177 = vmul.f32 %v149, %v160
    %v178 = vmul.f32 %v150, %v165
    %v179 = vmul.f32 %v151, %v170
    %v180 = vmul.f32 %v152, %v175
    %v181 = vadd.f32 %v177, %v178
    %v182 = vadd.f32 %v181, %v179
    %v183 = vadd.f32 %v182, %v180
    %v184 = vrot.slane %v183, 4
    %v185 = vadd.f32 %v183, %v184
    %v186 = vrot.slane %v185, 2
    %v187 = vadd.f32 %v185, %v186
    %v188 = vrot.slane %v187, 1
    %v189 = vadd.f32 %v187, %v188
    %s190 = sld [smem:[#allocation2]]
    %v191 = vstv %s190
    %v192 = vadd.f32 %v189, %v191
    %193 = vst [vmem:[#allocation3] sm:$0x1] %v192
    // Predicated region
    $region22: #{tpu_custom_call.1} parent=1 // pred_check
      _
    $region23: #{tpu_custom_call.1} parent=1 // pred_check_branch
      %195 = sbr.rel (0) target = $region25
    $region24: #{tpu_custom_call.1} parent=1 // pred_region
      %s197 = ssub.s32 16, 16
      %198 = vsyncadd [#allocation4], %s197
      %s200 = sshll.u32 [#allocation3], 4
      %s201 = int_to_ptr.vmem [resolvable:$true] %s200
      %203 = dma.vmem_to_hbm [thread:$0]  %s201, 16, %s5, [#allocation4]
    $region25: #{tpu_custom_call.1} parent=1 // pred_fallthru
      _
    // Predicated region
    $region26: #{tpu_custom_call.1} parent=1 // pred_check
      _
    $region27: #{tpu_custom_call.1} parent=1 // pred_check_branch
      %205 = sbr.rel (0) target = $region29
    $region28: #{tpu_custom_call.1} parent=1 // pred_region
      %206 = dma.done [#allocation4], 16
    $region29: #{tpu_custom_call.1} parent=1 // pred_fallthru
      _
    %207 = vsyncpa [#allocation4], 1

</llo_original>
